<compile_context>
chip_gen: v6e
topology: v6e:2x2x1
jax: 0.10.0
libtpu: 0.0.40
codegen_flags: <defaults>
</compile_context>

<pallas_src>
import functools

import jax
import jax.numpy as jnp
from jax.experimental import pallas as pl
from jax.experimental.pallas import tpu as pltpu


def _make_fake_quant_kernel(inv_scale, scale, zero_point, qmin, qmax):
    """Build an elementwise fake-quant kernel with qparams baked as constants."""

    def kernel(x_ref, o_ref):
        x = x_ref[...].astype(jnp.float32)
        q = jnp.round(x * inv_scale) + zero_point
        q = jnp.clip(q, qmin, qmax)
        o_ref[...] = ((q - zero_point) * scale).astype(o_ref.dtype)

    return kernel


@functools.partial(jax.jit, static_argnames=("scale", "zero_point", "quant_min",
                                             "quant_max", "lane", "tile_rows"))
def fake_quantize(x, scale, zero_point, quant_min=-128.0, quant_max=127.0,
                  *, lane=1024, tile_rows=512):
    """Per-tensor affine fake quantize-dequantize of an arbitrary-shape tensor."""
    orig_shape = x.shape
    orig_dtype = x.dtype
    n = x.size

    # Pad the flat view so rows is a multiple of 8 sublanes (f32 fast path:
    # unmasked (8,128)-aligned loads/stores), then view as a lane-dense 2D slab.
    chunk = lane * 8
    n_pad = ((n + chunk - 1) // chunk) * chunk
    flat = x.reshape(-1)
    if n_pad != n:
        flat = jnp.pad(flat, (0, n_pad - n))
    rows = n_pad // lane
    x2d = flat.reshape(rows, lane)

    # ~2 MiB f32 tile (512, 1024); shrink to full extent for tiny inputs.
    tile_r = min(tile_rows, rows)
    grid = (pl.cdiv(rows, tile_r),)

    kernel = _make_fake_quant_kernel(
        float(1.0 / scale), float(scale), float(zero_point),
        float(quant_min), float(quant_max),
    )

    out2d = pl.pallas_call(
        kernel,
        out_shape=jax.ShapeDtypeStruct((rows, lane), orig_dtype),
        grid_spec=pltpu.PrefetchScalarGridSpec(
            num_scalar_prefetch=0,
            grid=grid,
            in_specs=[pl.BlockSpec((tile_r, lane), lambda i: (i, 0))],
            out_specs=pl.BlockSpec((tile_r, lane), lambda i: (i, 0)),
        ),
        compiler_params=pltpu.CompilerParams(
            dimension_semantics=("parallel",),
        ),
    )(x2d)

    out_flat = out2d.reshape(-1)
    if n_pad != n:
        out_flat = out_flat[:n]
    return out_flat.reshape(orig_shape)


def fake_quantize_ref(x, scale, zero_point, quant_min=-128.0, quant_max=127.0):
    q = jnp.round(x.astype(jnp.float32) / scale) + zero_point
    q = jnp.clip(q, quant_min, quant_max)
    return ((q - zero_point) * scale).astype(x.dtype)


if __name__ == "__main__":
    key = jax.random.PRNGKey(0)

    # Deterministic fake-quantizer parameters (symmetric int8-style range).
    scale = 0.05
    zero_point = 0.0

    # Small NCHW input matching the module's forward: batch=2, channels=4, 16x16.
    x_small = jax.random.normal(key, (2, 4, 16, 16), dtype=jnp.float32)
    out_small = jax.block_until_ready(fake_quantize(x_small, scale, zero_point))
    ref_small = fake_quantize_ref(x_small, scale, zero_point)
    assert out_small.shape == x_small.shape and out_small.dtype == x_small.dtype
    assert jnp.allclose(out_small, ref_small, atol=1e-6), "mismatch (small) vs reference"

    # A modestly larger input to exercise the multi-tile, pipelined path.
    key2 = jax.random.PRNGKey(1)
    x_big = jax.random.normal(key2, (8, 32, 64, 64), dtype=jnp.float32)  # 1M elems
    out_big = jax.block_until_ready(fake_quantize(x_big, scale, zero_point))
    ref_big = fake_quantize_ref(x_big, scale, zero_point)
    assert jnp.allclose(out_big, ref_big, atol=1e-6), "mismatch (tiled) vs reference"

    print("KERNEL_OK")
</pallas_src>

<mosaic_0001>
module attributes {stable_mosaic.version = 11 : i64} {
  func.func @kernel(%arg0: i32, %arg1: memref<8x1024xf32, #tpu.memory_space<vmem>>, %arg2: memref<8x1024xf32, #tpu.memory_space<vmem>>) attributes {dimension_semantics = [#tpu.dimension_semantics<parallel>], iteration_bounds = array<i64: 1>, scalar_prefetch = 0 : i64, scratch_operands = 0 : i64, tpu.core_type = #tpu.core_type<tc>, window_params = [{transform_indices = @transform_0, window_bounds = array<i64: 8, 1024>}, {transform_indices = @transform_1, window_bounds = array<i64: 8, 1024>}]} {
    %c0 = arith.constant 0 : index
    %c0_0 = arith.constant 0 : index
    %0 = vector.load %arg1[%c0, %c0_0] : memref<8x1024xf32, #tpu.memory_space<vmem>>, vector<8x1024xf32>
    %cst = arith.constant 2.000000e+01 : f32
    %1 = vector.broadcast %cst : f32 to vector<8x1024xf32>
    %2 = arith.mulf %0, %1 : vector<8x1024xf32>
    %3 = math.roundeven %2 : vector<8x1024xf32>
    %cst_1 = arith.constant 0.000000e+00 : f32
    %4 = vector.broadcast %cst_1 : f32 to vector<8x1024xf32>
    %5 = arith.addf %3, %4 : vector<8x1024xf32>
    %cst_2 = arith.constant -1.280000e+02 : f32
    %cst_3 = arith.constant 1.270000e+02 : f32
    %6 = vector.broadcast %cst_2 : f32 to vector<8x1024xf32>
    %7 = arith.maximumf %6, %5 : vector<8x1024xf32>
    %8 = vector.broadcast %cst_3 : f32 to vector<8x1024xf32>
    %9 = arith.minimumf %8, %7 : vector<8x1024xf32>
    %cst_4 = arith.constant 0.000000e+00 : f32
    %10 = vector.broadcast %cst_4 : f32 to vector<8x1024xf32>
    %11 = arith.subf %9, %10 : vector<8x1024xf32>
    %cst_5 = arith.constant 5.000000e-02 : f32
    %12 = vector.broadcast %cst_5 : f32 to vector<8x1024xf32>
    %13 = arith.mulf %11, %12 : vector<8x1024xf32>
    %c0_6 = arith.constant 0 : index
    %c0_7 = arith.constant 0 : index
    %14 = vector.load %arg2[%c0_6, %c0_7] : memref<8x1024xf32, #tpu.memory_space<vmem>>, vector<8x1024xf32>
    tpu.vector_store %arg2[%c0_6, %c0_7], %13 {strides = array<i32>} : memref<8x1024xf32, #tpu.memory_space<vmem>>, vector<8x1024xf32>,
    return
  }
  func.func @transform_0(%arg0: i32) -> (i32, i32) {
    %c0_i32 = arith.constant 0 : i32
    %c0_i32_0 = arith.constant 0 : i32
    return %arg0, %c0_i32 : i32, i32
  }
  func.func @transform_1(%arg0: i32) -> (i32, i32) {
    %c0_i32 = arith.constant 0 : i32
    %c0_i32_0 = arith.constant 0 : i32
    return %arg0, %c0_i32 : i32, i32
  }
}

</mosaic_0001>

<llo_original>
// kernel: fake_quantize.1
$region0: #{fake_quantize.1}
  #allocation0 [shape = 'u32[]', space=smem, size = 0x4, offset = 0x4, fixed_abs, tag = 'smem constant byte address 0x4 - core index']
  #allocation1 [shape = 'u32[144,128]{1,0:T(1,128)}', space=vmem, size = 0x12000, scoped, tag = 'internal scratch']
  %s0 = inlined_call_operand.vmem [shape: f32[8,1024], index: 0, kind: input, shape index: {}]
  %s1 = inlined_call_operand.vmem [shape: f32[8,1024], index: 1, kind: output, shape index: {}]
  %s2 = sld [smem:[#allocation0]]
  $region14: #{fake_quantize.1} parent=0
    _
  %s4 = ssub.s32 1, %s2
  %s5 = scalar_select 0, %s4, %s2
  // Predicated region
  $region2: #{fake_quantize.1} parent=0 // pred_check
    _
  $region3: #{fake_quantize.1} parent=0 // pred_check_branch
    %7 = sbr.rel (0) target = $region5
  $region4: #{fake_quantize.1} parent=0 // pred_region
    _
  $region5: #{fake_quantize.1} parent=0 // pred_fallthru
    _
  %v8 = vld [vmem:[%s0] sm:$0xff]
  %v9 = vld [vmem:[%s0 + $0x8] sm:$0xff]
  %v10 = vld [vmem:[%s0 + $0x10] sm:$0xff]
  %v11 = vld [vmem:[%s0 + $0x18] sm:$0xff]
  %v12 = vld [vmem:[%s0 + $0x20] sm:$0xff]
  %v13 = vld [vmem:[%s0 + $0x28] sm:$0xff]
  %v14 = vld [vmem:[%s0 + $0x30] sm:$0xff]
  %v15 = vld [vmem:[%s0 + $0x38] sm:$0xff]
  %v16 = vmul.f32 %v8, 20.0
  %v17 = vmul.f32 %v9, 20.0
  %v18 = vmul.f32 %v10, 20.0
  %v19 = vmul.f32 %v11, 20.0
  %v20 = vmul.f32 %v12, 20.0
  %v21 = vmul.f32 %v13, 20.0
  %v22 = vmul.f32 %v14, 20.0
  %v23 = vmul.f32 %v15, 20.0
  %v24 = vround.ne.pseudo %v16
  %v25 = vround.ne.pseudo %v17
  %v26 = vround.ne.pseudo %v18
  %v27 = vround.ne.pseudo %v19
  %v28 = vround.ne.pseudo %v20
  %v29 = vround.ne.pseudo %v21
  %v30 = vround.ne.pseudo %v22
  %v31 = vround.ne.pseudo %v23
  %v32 = vadd.f32 %v24, 0.0
  %v33 = vadd.f32 %v25, 0.0
  %v34 = vadd.f32 %v26, 0.0
  %v35 = vadd.f32 %v27, 0.0
  %v36 = vadd.f32 %v28, 0.0
  %v37 = vadd.f32 %v29, 0.0
  %v38 = vadd.f32 %v30, 0.0
  %v39 = vadd.f32 %v31, 0.0
  %v40 = vmax.f32 %v32, -128.0
  %v41 = vmax.f32 %v33, -128.0
  %v42 = vmax.f32 %v34, -128.0
  %v43 = vmax.f32 %v35, -128.0
  %v44 = vmax.f32 %v36, -128.0
  %v45 = vmax.f32 %v37, -128.0
  %v46 = vmax.f32 %v38, -128.0
  %v47 = vmax.f32 %v39, -128.0
  %v48 = vmin.f32 %v40, 127.0
  %v49 = vmin.f32 %v41, 127.0
  %v50 = vmin.f32 %v42, 127.0
  %v51 = vmin.f32 %v43, 127.0
  %v52 = vmin.f32 %v44, 127.0
  %v53 = vmin.f32 %v45, 127.0
  %v54 = vmin.f32 %v46, 127.0
  %v55 = vmin.f32 %v47, 127.0
  %v56 = vmul.f32 %v48, 0.05
  %v57 = vmul.f32 %v49, 0.05
  %v58 = vmul.f32 %v50, 0.05
  %v59 = vmul.f32 %v51, 0.05
  %v60 = vmul.f32 %v52, 0.05
  %v61 = vmul.f32 %v53, 0.05
  %v62 = vmul.f32 %v54, 0.05
  %v63 = vmul.f32 %v55, 0.05
  %64 = vst [vmem:[%s1] sm:$0xff] %v56
  %65 = vst [vmem:[%s1 + $0x8] sm:$0xff] %v57
  %66 = vst [vmem:[%s1 + $0x10] sm:$0xff] %v58
  %67 = vst [vmem:[%s1 + $0x18] sm:$0xff] %v59
  %68 = vst [vmem:[%s1 + $0x20] sm:$0xff] %v60
  %69 = vst [vmem:[%s1 + $0x28] sm:$0xff] %v61
  %70 = vst [vmem:[%s1 + $0x30] sm:$0xff] %v62
  %71 = vst [vmem:[%s1 + $0x38] sm:$0xff] %v63
  // Predicated region
  $region6: #{fake_quantize.1} parent=0 // pred_check
    _
  $region7: #{fake_quantize.1} parent=0 // pred_check_branch
    %73 = sbr.rel (0) target = $region9
  $region8: #{fake_quantize.1} parent=0 // pred_region
    _
  $region9: #{fake_quantize.1} parent=0 // pred_fallthru
    _
  // Predicated region
  $region10: #{fake_quantize.1} parent=0 // pred_check
    _
  $region11: #{fake_quantize.1} parent=0 // pred_check_branch
    %75 = sbr.rel (0) target = $region13
  $region12: #{fake_quantize.1} parent=0 // pred_region
    _
  $region13: #{fake_quantize.1} parent=0 // pred_fallthru
    _

</llo_original>
